<compile_context>
chip_gen: v7x
topology: tpu7x:2x2x1
jax: 0.10.0
libtpu: 0.0.40
codegen_flags: <defaults>
</compile_context>

<pallas_src>
import functools

import jax
import jax.numpy as jnp
from jax.experimental import pallas as pl
from jax.experimental.pallas import tpu as pltpu


def _round_up(n, m):
    return ((n + m - 1) // m) * m


def _resident_spec(block_shape, index_map):
    """BlockSpec for a grid-constant operand: resident in VMEM, single-buffered.

    Falls back to a plain BlockSpec (default double buffering) if this JAX
    version does not expose pipeline_mode / Buffered.
    """
    try:
        return pl.BlockSpec(block_shape, index_map, pipeline_mode=pl.Buffered(1))
    except (AttributeError, TypeError):
        return pl.BlockSpec(block_shape, index_map)


def _lora_linear_kernel(x_ref, wt_ref, bias_ref, o_ref):
    # In-kernel cast of the activation tile to the (possibly bf16) weight
    # dtype: rides VALU slots that have slack while the MXU is busy and avoids
    # a separate wrapper-side XLA pass over x in HBM.
    x = x_ref[...].astype(wt_ref.dtype)
    # Main matmul: (tm, D_in) @ (D_in, D_out), f32 accumulation on the MXU.
    y = jnp.dot(x, wt_ref[...], preferred_element_type=jnp.float32)
    # Epilogue: scale/shift were folded into wt/bias in the wrapper -> one add.
    o_ref[...] = (y + bias_ref[...]).astype(o_ref.dtype)


def merge_lora_weights(weight, a, b, bias, scale, shift, *,
                       compute_dtype=jnp.bfloat16):
    """One-time fold of the LoRA delta + scale/shift into (w_t, bias2).

    weight: (D_out, D_in); a: (D_out, r); b: (r, D_in); bias: (D_out,) or None;
    scale/shift broadcastable to (..., D_out) (per-output-feature).
    Returns w_t: (D_in, D_out) in compute_dtype (f32 if compute_dtype is None)
    and bias2: (1, D_out) f32.

    For decode-style repeated calls with fixed weights, call this ONCE and feed
    the result to lora_linear_premerged (avoids re-reading/merging W per call).
    """
    D_out, D_in = weight.shape
    scale1 = jnp.asarray(scale).reshape(-1).astype(jnp.float32)   # (D_out,)
    shift1 = jnp.asarray(shift).reshape(-1).astype(jnp.float32)   # (D_out,)
    assert scale1.size == D_out and shift1.size == D_out, (
        "scale/shift must be per-output-feature (size == D_out)")

    # Merge the LoRA delta in f32 so it is not lost to bf16 rounding.
    w_eff = weight.astype(jnp.float32) + a.astype(jnp.float32) @ b.astype(jnp.float32)
    # Pre-transpose so the kernel computes x @ W_t (no in-kernel transpose),
    # and fold the per-output-feature scale into the weight columns.
    w_t = w_eff.T * scale1[None, :]                                # (D_in, D_out)
    # Fold scale/shift into the bias: out = x @ W_t + (bias*scale + shift).
    bias_f = (bias.astype(jnp.float32) if bias is not None
              else jnp.zeros((D_out,), jnp.float32))
    bias2 = (bias_f * scale1 + shift1).reshape(1, D_out)

    if compute_dtype is not None:
        w_t = w_t.astype(compute_dtype)
    return w_t, bias2


@functools.partial(jax.jit, static_argnames=("tm",))
def lora_linear_premerged(x, w_t, bias2, *, tm=1024):
    """x: (..., D_in); w_t: (D_in, D_out) pre-merged/transposed/scaled;
    bias2: (1, D_out) pre-folded bias. Output: (..., D_out) in x.dtype."""
    orig_shape = x.shape
    D_in = orig_shape[-1]
    D_out = w_t.shape[1]
    M = 1
    for d in orig_shape[:-1]:
        M *= int(d)
    x2 = x.reshape(M, D_in)

    out_dtype = x.dtype
    x_elt = jnp.dtype(x2.dtype).itemsize
    w_elt = jnp.dtype(w_t.dtype).itemsize
    out_elt = jnp.dtype(out_dtype).itemsize

    # Row alignment follows the sublane packing of the narrowest dtype that
    # tiles over M (x tile, out tile): 8 rows for f32, 16 for bf16, 32 for 8-bit.
    row_align = 32 // min(x_elt, out_elt)
    tm_eff = max(row_align, min(tm, _round_up(M, row_align)))
    # Ragged trailing block is handled by Pallas -> no full-array jnp.pad of x.
    grid_m = pl.cdiv(M, tm_eff)

    # Right-size the VMEM budget: double-buffered x/out row tiles, single-
    # buffered resident weight + bias, f32 matmul intermediate, +25% headroom.
    vmem_need = (2 * tm_eff * D_in * x_elt        # pipelined x tiles
                 + 2 * tm_eff * D_out * out_elt   # pipelined out tiles
                 + D_in * D_out * w_elt           # resident merged weight (x1)
                 + D_out * 4                      # folded bias
                 + tm_eff * D_out * 4)            # f32 matmul intermediate
    vmem_limit = min(max(int(vmem_need * 1.25) + (2 << 20), 16 << 20), 96 << 20)

    cost = pl.CostEstimate(
        flops=2 * M * D_in * D_out,
        transcendentals=0,
        bytes_accessed=(M * D_in * x_elt          # x (read once, weight resident)
                        + D_in * D_out * w_elt    # merged weight
                        + D_out * 4               # bias
                        + M * D_out * out_elt),   # output
    )

    out2 = pl.pallas_call(
        _lora_linear_kernel,
        out_shape=jax.ShapeDtypeStruct((M, D_out), out_dtype),
        grid=(grid_m,),
        in_specs=[
            # x row tile: pipelined/double-buffered over the M grid.
            pl.BlockSpec((tm_eff, D_in), lambda i: (i, 0)),
            # Merged+transposed weight: constant index map -> VMEM-resident,
            # single-buffered (double buffering buys nothing here).
            _resident_spec((D_in, D_out), lambda i: (0, 0)),
            # Folded bias: also resident + single-buffered.
            _resident_spec((1, D_out), lambda i: (0, 0)),
        ],
        out_specs=pl.BlockSpec((tm_eff, D_out), lambda i: (i, 0)),
        compiler_params=pltpu.CompilerParams(
            # TODO(synk): for tiny-M decode shapes on v7x (2 TCs), add a second
            # "parallel" grid axis over D_out so both cores get work.
            dimension_semantics=("parallel",),
            vmem_limit_bytes=vmem_limit,
        ),
        cost_estimate=cost,
    )(x2, w_t, bias2)

    return out2.reshape(*orig_shape[:-1], D_out)


@functools.partial(jax.jit, static_argnames=("tm", "compute_dtype"))
def lora_linear(x, weight, a, b, bias, scale, shift, *, tm=1024,
                compute_dtype=jnp.bfloat16):
    """Full per-call path: merge LoRA weights (f32) then run the matmul kernel.

    x: (B, T, D_in); weight: (D_out, D_in); a: (D_out, r); b: (r, D_in);
    bias: (D_out,) or None; scale/shift broadcastable to (..., D_out).
    compute_dtype: MXU input dtype for x/merged-weight (default bf16, f32 acc);
    pass None for an exact f32 path.
    """
    w_t, bias2 = merge_lora_weights(weight, a, b, bias, scale, shift,
                                    compute_dtype=compute_dtype)
    return lora_linear_premerged(x, w_t, bias2, tm=tm)


if __name__ == "__main__":
    # Small shapes implied by the module: sequence input (B, T, D), square linear.
    B, T, D, RANK = 2, 8, 32, 4

    key = jax.random.PRNGKey(0)
    kx, kw, kbias, ka, kb, ks, kh = jax.random.split(key, 7)

    x = jax.random.normal(kx, (B, T, D), dtype=jnp.float32)
    weight = jax.random.normal(kw, (D, D), dtype=jnp.float32) * 0.05
    bias = jax.random.normal(kbias, (D,), dtype=jnp.float32) * 0.01
    a = jax.random.normal(ka, (D, RANK), dtype=jnp.float32)
    b = jax.random.normal(kb, (RANK, D), dtype=jnp.float32)
    scale = 1.0 + 0.1 * jax.random.normal(ks, (1, 1, D), dtype=jnp.float32)
    shift = 0.05 * jax.random.normal(kh, (1, 1, D), dtype=jnp.float32)

    # Pure-JAX reference (same math as the PyTorch forward).
    w_eff = weight + a @ b
    ref = (x @ w_eff.T + bias) * scale + shift

    # 1) Default bf16 MXU path (production configuration) + pre-merged weights.
    w_t, bias2 = merge_lora_weights(weight, a, b, bias, scale, shift)
    out_bf16 = jax.block_until_ready(lora_linear(x, weight, a, b, bias, scale, shift))
    out_pm = jax.block_until_ready(lora_linear_premerged(x, w_t, bias2))
    assert out_bf16.shape == (B, T, D)
    # Tight check against a dtype-matched bf16 reference.
    ref_bf = ((x.reshape(-1, D).astype(jnp.bfloat16).astype(jnp.float32)
               @ w_t.astype(jnp.float32)) + bias2).reshape(B, T, D)
    assert jnp.allclose(out_bf16, ref_bf, atol=1e-3, rtol=1e-3)
    assert jnp.allclose(out_pm, out_bf16, atol=1e-6, rtol=1e-6)
    # Loose sanity check against the exact f32 reference (bf16 rounding noise).
    assert jnp.allclose(out_bf16, ref, atol=5e-1, rtol=5e-2)

    # 2) Exact f32 path for a tight numerical check against the reference.
    out_f32 = jax.block_until_ready(
        lora_linear(x, weight, a, b, bias, scale, shift, compute_dtype=None))
    assert jnp.allclose(out_f32, ref, atol=1e-4, rtol=1e-4)

    print("KERNEL_OK")
</pallas_src>

<mosaic_0001>
module attributes {stable_mosaic.version = 11 : i64} {
  func.func @_lora_linear_kernel(%arg0: i32, %arg1: memref<16x32xf32, #tpu.memory_space<vmem>>, %arg2: memref<32x32xbf16, #tpu.memory_space<vmem>>, %arg3: memref<1x32xf32, #tpu.memory_space<vmem>>, %arg4: memref<16x32xf32, #tpu.memory_space<vmem>>) attributes {dimension_semantics = [#tpu.dimension_semantics<parallel>], iteration_bounds = array<i64: 1>, scalar_prefetch = 0 : i64, scratch_operands = 0 : i64, tpu.core_type = #tpu.core_type<tc>, window_params = [{transform_indices = @transform_0, window_bounds = array<i64: 16, 32>}, {pipeline_mode = #tpu.pipeline_mode<synchronous>, transform_indices = @transform_1, window_bounds = array<i64: 32, 32>}, {pipeline_mode = #tpu.pipeline_mode<synchronous>, transform_indices = @transform_2, window_bounds = array<i64: 1, 32>}, {transform_indices = @transform_3, window_bounds = array<i64: 16, 32>}]} {
    %c0 = arith.constant 0 : index
    %c0_0 = arith.constant 0 : index
    %0 = vector.load %arg1[%c0, %c0_0] : memref<16x32xf32, #tpu.memory_space<vmem>>, vector<16x32xf32>
    %1 = arith.truncf %0 : vector<16x32xf32> to vector<16x32xbf16>
    %c0_1 = arith.constant 0 : index
    %c0_2 = arith.constant 0 : index
    %2 = vector.load %arg2[%c0_1, %c0_2] : memref<32x32xbf16, #tpu.memory_space<vmem>>, vector<32x32xbf16>
    %cst = arith.constant dense<0.000000e+00> : vector<16x32xf32>
    %3 = tpu.matmul %1, %2, %cst {dimension_numbers = #tpu.dot_dimension_numbers<[1], [0], [0], [1], [0, 0, 1, 1], [], []>} : vector<16x32xbf16>, vector<32x32xbf16>, vector<16x32xf32> -> vector<16x32xf32>
    %c0_3 = arith.constant 0 : index
    %c0_4 = arith.constant 0 : index
    %4 = vector.load %arg3[%c0_3, %c0_4] : memref<1x32xf32, #tpu.memory_space<vmem>>, vector<1x32xf32>
    %5 = vector.broadcast %4 : vector<1x32xf32> to vector<16x32xf32>
    %6 = arith.addf %3, %5 : vector<16x32xf32>
    %c0_5 = arith.constant 0 : index
    %c0_6 = arith.constant 0 : index
    %7 = vector.load %arg4[%c0_5, %c0_6] : memref<16x32xf32, #tpu.memory_space<vmem>>, vector<16x32xf32>
    tpu.vector_store %arg4[%c0_5, %c0_6], %6 {strides = array<i32>} : memref<16x32xf32, #tpu.memory_space<vmem>>, vector<16x32xf32>,
    return
  }
  func.func @transform_0(%arg0: i32) -> (i32, i32) {
    %c0_i32 = arith.constant 0 : i32
    %c0_i32_0 = arith.constant 0 : i32
    return %arg0, %c0_i32 : i32, i32
  }
  func.func @transform_1(%arg0: i32) -> (i32, i32) {
    %c0_i32 = arith.constant 0 : i32
    %c0_i32_0 = arith.constant 0 : i32
    %c0_i32_1 = arith.constant 0 : i32
    return %c0_i32, %c0_i32_0 : i32, i32
  }
  func.func @transform_2(%arg0: i32) -> (i32, i32) {
    %c0_i32 = arith.constant 0 : i32
    %c0_i32_0 = arith.constant 0 : i32
    %c0_i32_1 = arith.constant 0 : i32
    return %c0_i32, %c0_i32_0 : i32, i32
  }
  func.func @transform_3(%arg0: i32) -> (i32, i32) {
    %c0_i32 = arith.constant 0 : i32
    %c0_i32_0 = arith.constant 0 : i32
    return %arg0, %c0_i32 : i32, i32
  }
}

</mosaic_0001>

<llo_original>
// kernel: lora_linear_premerged.1
$region0: #{lora_linear_premerged.1}
  #allocation0 [shape = 'u32[]', space=smem, size = 0x4, offset = 0x4, fixed_abs, tag = 'smem constant byte address 0x4 - core index']
  #allocation1 [shape = 'u32[144,128]{1,0:T(1,128)}', space=vmem, size = 0x12000, scoped, tag = 'internal scratch']
  %s0 = inlined_call_operand.hbm [shape: f32[16,32], index: 0, kind: input, shape index: {}]
  %s1 = inlined_call_operand.hbm [shape: bf16[32,32], index: 1, kind: input, shape index: {}]
  %s2 = inlined_call_operand.vmem [shape: f32[1,32], index: 2, kind: input, shape index: {}]
  %s3 = inlined_call_operand.hbm [shape: f32[16,32], index: 3, kind: output, shape index: {}]
  %s4 = sld [smem:[#allocation0]]
  $region30: #{lora_linear_premerged.1} parent=0
    _
  %s6 = ssub.s32 1, %s4
  %s7 = scalar_select 0, %s6, %s4
  $region1: #{lora_linear_premerged.1} parent=0
    #allocation2 [shape = 'u8[8192]{0}', space=vmem, size = 0x2000, scoped, tag = 'input window, operand 0, single buffered']
    #allocation3 [shape = 's32[1]{0}', space=sflag, size = 0x4, scoped, tag = 'scoped memory for lora_linear_premerged.1']
    #allocation4 [shape = 's32[1]{0}', space=sflag, size = 0x4, scoped, tag = 'scoped memory for lora_linear_premerged.1']
    #allocation5 [shape = 'u8[8192]{0}', space=vmem, size = 0x2000, scoped, tag = 'input window, operand 1, single buffered']
    #allocation6 [shape = 's32[1]{0}', space=sflag, size = 0x4, scoped, tag = 'scoped memory for lora_linear_premerged.1']
    #allocation7 [shape = 'u8[8192]{0}', space=vmem, size = 0x2000, scoped, tag = 'output window, operand 0, single buffered']
    %8 = vsyncpa [#allocation3], 0
    %9 = vsyncpa [#allocation6], 0
    %10 = vsyncpa [#allocation4], 0
    // Predicated region
    $region2: #{lora_linear_premerged.1} parent=1 // pred_check
      _
    $region3: #{lora_linear_premerged.1} parent=1 // pred_check_branch
      %12 = sbr.rel (0) target = $region5
    $region4: #{lora_linear_premerged.1} parent=1 // pred_region
      %s14 = ssub.s32 256, 256
      %15 = vsyncadd [#allocation3], %s14
      %s16 = sshll.u32 [#allocation2], 4
      %s17 = int_to_ptr.vmem [resolvable:$true] %s16
      %22 = dma.hbm_to_vmem [thread:$0]  %s0, 256, %s17, [#allocation3], 128, 128, 8
    $region5: #{lora_linear_premerged.1} parent=1 // pred_fallthru
      _
    // Predicated region
    $region6: #{lora_linear_premerged.1} parent=1 // pred_check
      _
    $region7: #{lora_linear_premerged.1} parent=1 // pred_check_branch
      %24 = sbr.rel (0) target = $region9
    $region8: #{lora_linear_premerged.1} parent=1 // pred_region
      %s26 = ssub.s32 256, 256
      %27 = vsyncadd [#allocation6], %s26
      %s28 = sshll.u32 [#allocation5], 4
      %s29 = int_to_ptr.vmem [resolvable:$true] %s28
      %34 = dma.hbm_to_vmem [thread:$0]  %s1, 256, %s29, [#allocation6], 64, 64, 4
    $region9: #{lora_linear_premerged.1} parent=1 // pred_fallthru
      _
    // Predicated region
    $region10: #{lora_linear_premerged.1} parent=1 // pred_check
      _
    $region11: #{lora_linear_premerged.1} parent=1 // pred_check_branch
      %36 = sbr.rel (0) target = $region13
    $region12: #{lora_linear_premerged.1} parent=1 // pred_region
      _
    $region13: #{lora_linear_premerged.1} parent=1 // pred_fallthru
      _
    // Predicated region
    $region14: #{lora_linear_premerged.1} parent=1 // pred_check
      _
    $region15: #{lora_linear_premerged.1} parent=1 // pred_check_branch
      %38 = sbr.rel (0) target = $region17
    $region16: #{lora_linear_premerged.1} parent=1 // pred_region
      %39 = dma.done [#allocation3], 256
    $region17: #{lora_linear_premerged.1} parent=1 // pred_fallthru
      _
    // Predicated region
    $region18: #{lora_linear_premerged.1} parent=1 // pred_check
      _
    $region19: #{lora_linear_premerged.1} parent=1 // pred_check_branch
      %41 = sbr.rel (0) target = $region21
    $region20: #{lora_linear_premerged.1} parent=1 // pred_region
      %42 = dma.done [#allocation6], 256
    $region21: #{lora_linear_premerged.1} parent=1 // pred_fallthru
      _
    %v44 = vld [vmem:[#allocation2] sm:$0xff]
    %v45 = vld [vmem:[#allocation2 + $0x8] sm:$0xff]
    %v46 = vpack.c.bf16 %v45, %v44
    %v47 = vld [vmem:[#allocation5] sm:$0xf]
    %v48 = vld [vmem:[#allocation5 + $0x4] sm:$0xf]
    %v49 = vld [vmem:[#allocation5 + $0x8] sm:$0xf]
    %v50 = vld [vmem:[#allocation5 + $0xc] sm:$0xf]
    %v51 = vld [vmem:[%s2] sm:$0x1]
    %v53 = vlaneseq
    %v54 = vshrl.u32 %v53, 7
    %v55 = vsub.s32 0, %v54
    %v56 = vrot.slane %v51, %v55
    %v62 = vunpack.c.l.b16 %v47
    %v63 = vunpack.c.l.b16 %v48
    %v64 = vunpack.c.l.b16 %v49
    %v65 = vunpack.c.l.b16 %v50
    %v66 = vpack.c.b16 %v63, %v62
    %v67 = vpack.c.b16 %v65, %v64
    %vm70 = vcmask 261120
    %v72 = vsel %vm70, %v46, 0
    %74 = vmatprep.subr.bf16.mxu0 0
    %75 = vmatpush1.bf16.msra.mxu0 %v66
    %76 = vmatprep.subr.bf16.mxu0 0
    %77 = vmatpush1.bf16.msra.mxu0 %v67
    %78 = vmatprep.subr.bf16.mxu0 0
    %79 = vmatpush1.bf16.msra.mxu0 0
    %80 = vmatprep.subr.bf16.mxu0 0
    %81 = vmatpush1.bf16.msra.mxu0 0
    %82 = vmatprep.subr.bf16.mxu0 0
    %83 = vmatpush1.bf16.msra.mxu0 0
    %84 = vmatprep.subr.bf16.mxu0 0
    %85 = vmatpush1.bf16.msra.mxu0 0
    %86 = vmatprep.subr.bf16.mxu0 0
    %87 = vmatpush1.bf16.msra.mxu0 0
    %88 = vmatprep.subr.bf16.mxu0 0
    %89 = vmatpush1.bf16.msra.mxu0 0
    %90 = vmatprep.subr.bf16.mxu0 0
    %91 = vmatpush1.bf16.msra.mxu0 0
    %92 = vmatprep.subr.bf16.mxu0 0
    %93 = vmatpush1.bf16.msra.mxu0 0
    %94 = vmatprep.subr.bf16.mxu0 0
    %95 = vmatpush1.bf16.msra.mxu0 0
    %96 = vmatprep.subr.bf16.mxu0 0
    %97 = vmatpush1.bf16.msra.mxu0 0
    %98 = vmatprep.subr.bf16.mxu0 0
    %99 = vmatpush1.bf16.msra.mxu0 0
    %100 = vmatprep.subr.bf16.mxu0 0
    %101 = vmatpush1.bf16.msra.mxu0 0
    %102 = vmatprep.subr.bf16.mxu0 0
    %103 = vmatpush1.bf16.msra.mxu0 0
    %104 = vmatprep.subr.bf16.mxu0 0
    %105 = vmatpush1.bf16.msra.mxu0 0
    %106 = vmatprep.mubr.bf16.mxu0 0
    %107 = vmatmul.mubr.bf16.gmra.mrb[0].mxu0 %v72
    %v108 = vpop.f32.mrb[0].mxu0
    %v109 = vadd.f32 %v56, %v108
    %v110 = vpop.f32.mrb[0].mxu0
    %v111 = vpop.f32.mrb[0].mxu0
    %v112 = vadd.f32 %v56, %v111
    %v113 = vpop.f32.mrb[0].mxu0
    %114 = vdwg.mxu0
    %115 = vst.msk [vmem:[#allocation7] sm:$0xff] %vm70, %v109
    %116 = vst.msk [vmem:[#allocation7 + $0x8] sm:$0xff] %vm70, %v112
    // Predicated region
    $region22: #{lora_linear_premerged.1} parent=1 // pred_check
      _
    $region23: #{lora_linear_premerged.1} parent=1 // pred_check_branch
      %118 = sbr.rel (0) target = $region25
    $region24: #{lora_linear_premerged.1} parent=1 // pred_region
      %s120 = ssub.s32 256, 256
      %121 = vsyncadd [#allocation4], %s120
      %s122 = sshll.u32 [#allocation7], 4
      %s123 = int_to_ptr.vmem [resolvable:$true] %s122
      %128 = dma.vmem_to_hbm [thread:$0]  %s123, 256, %s3, [#allocation4], 128, 128, 8
    $region25: #{lora_linear_premerged.1} parent=1 // pred_fallthru
      _
    // Predicated region
    $region26: #{lora_linear_premerged.1} parent=1 // pred_check
      _
    $region27: #{lora_linear_premerged.1} parent=1 // pred_check_branch
      %130 = sbr.rel (0) target = $region29
    $region28: #{lora_linear_premerged.1} parent=1 // pred_region
      %131 = dma.done [#allocation4], 256
    $region29: #{lora_linear_premerged.1} parent=1 // pred_fallthru
      _
    %132 = vsyncpa [#allocation3], 1
    %133 = vsyncpa [#allocation6], 1
    %134 = vsyncpa [#allocation4], 1

</llo_original>
